<compile_context>
chip_gen: v5e
topology: v5e:2x2
jax: 0.10.0
libtpu: 0.0.40
codegen_flags: <defaults>
</compile_context>

<pallas_src>
import functools
import math

import jax
import jax.numpy as jnp
import numpy as np
from jax.experimental import pallas as pl
from jax.experimental.pallas import tpu as pltpu


def _round_up(x, m):
    return ((x + m - 1) // m) * m


def _vmem_budgets():
    """(scoped vmem limit, per-grid-step tile budget) in bytes, per generation."""
    kind = ""
    try:
        kind = (jax.devices()[0].device_kind or "").lower()
    except Exception:
        pass
    # 128-MiB-VMEM parts: large tiles reach the HBM roofline.
    if any(tag in kind for tag in ("v4", "v5", "v6")):
        return 100 * 1024 * 1024, 72 * 1024 * 1024
    # v7x (64 MiB per TC) or unknown/interpret: conservative.
    return 48 * 1024 * 1024, 26 * 1024 * 1024


def _tile_vmem_bytes(th, W, cin, cout):
    """Conservative per-grid-step VMEM footprint for row-tile height `th`.

    Counts double-buffered pipeline blocks (input tile, halo rows, output tile,
    resident weights/bias) plus in-kernel temporaries (H-padded tile, two roll
    results, two masked width-shifted copies, column iota, f32 accumulator and
    f32 pre-cast result).
    """
    n = th * W
    npad = (th + 2) * W
    in_tile = n * cin * 2                       # bf16 input tile
    halo = 2 * W * cin * 2                      # bf16 halo rows
    out_tile = n * cout * 4                     # worst-case f32 output tile
    weights = 9 * cin * cout * 2 + cout * 4     # bf16 taps + f32 bias
    temps = 5 * npad * cin * 2 + npad * 4       # xp + 2 roll + 2 masked + iota
    acc = 2 * n * cout * 4                      # f32 accumulator + f32 result
    return 2 * (in_tile + halo + out_tile + weights) + temps + acc


def _pick_tile_h(H, W, cin, cout, batch, budget):
    """Largest row-tile height whose working set fits `budget` (cdiv tiling)."""
    fit = [th for th in range(1, H + 1)
           if _tile_vmem_bytes(th, W, cin, cout) <= budget]
    th = max(fit) if fit else 1
    # Keep enough grid steps for DMA/compute overlap (and v7x megacore sharding),
    # but never shrink below ~8 rows just to lengthen the grid.
    min_steps = 4
    nt = -(-H // th)
    if batch * nt < min_steps and H > 8:
        want_nt = min(-(-min_steps // batch), -(-H // 8))
        th = min(th, -(-H // want_nt))
    return th


# ---------------------------------------------------------------------------
# Kernels
# ---------------------------------------------------------------------------
def _matmul_bias_kernel(x_ref, w_ref, b_ref, o_ref, *, relu):
    """(n, K) @ (K, Cout) + bias (+ReLU) — wrapper-side-im2col path (tiny Cin)."""
    acc = jnp.dot(x_ref[...], w_ref[...], preferred_element_type=jnp.float32)
    res = acc + b_ref[...]
    if relu:
        res = jnp.maximum(res, 0.0)
    o_ref[...] = res.astype(o_ref.dtype)


def _conv3x3_kernel(x_ref, top_ref, bot_ref, w_ref, b_ref, o_ref, *, TH, W, relu):
    """3x3 'same' conv + bias (+ReLU) on one (batch, row-tile) block.

    x_ref:   (TH*W, Cin)    bf16 flattened-spatial row tile
    top_ref: (W, Cin)       bf16 halo row above tile (zeros at image top)
    bot_ref: (W, Cin)       bf16 halo row below tile (zeros at image bottom)
    w_ref:   (9, Cin, Cout) bf16 taps, (kh, kw) flattened in HWIO order
    b_ref:   (1, Cout)      f32 bias
    o_ref:   (TH*W, Cout)   output tile (Cout padded to a multiple of 128)
    """
    n = TH * W
    n_pad = (TH + 2) * W

    # H-padded flattened tile: [halo_top; tile; halo_bot] -> (n_pad, Cin)
    xp = jnp.concatenate([top_ref[...], x_ref[...], bot_ref[...]], axis=0)

    # Build the three width-shifted copies ONCE (XLU roll + border select with a
    # scalar 0); the kh shift later is a contiguous sublane row-slice.
    col = jax.lax.broadcasted_iota(jnp.int32, (n_pad, 1), 0) % W
    x_left = jnp.where(col != 0, pltpu.roll(xp, shift=1, axis=0), 0).astype(xp.dtype)
    # rotate by -1 == rotate by n_pad - 1 (pltpu.roll needs non-negative shift)
    x_right = jnp.where(col != W - 1,
                        pltpu.roll(xp, shift=n_pad - 1, axis=0), 0).astype(xp.dtype)
    x_shift = (x_left, xp, x_right)

    # Accumulate the 9 tap matmuls in a traced f32 value (no VMEM read-modify-write).
    # TODO(synk): on v7x, accumulate in the MXU result buffer instead.
    acc = None
    for kh in range(3):
        for kw in range(3):
            s = x_shift[kw][kh * W:kh * W + n, :]            # contiguous rows
            contrib = jnp.dot(s, w_ref[kh * 3 + kw],
                              preferred_element_type=jnp.float32)
            acc = contrib if acc is None else acc + contrib

    res = acc + b_ref[...]
    if relu:
        res = jnp.maximum(res, 0.0)
    o_ref[...] = res.astype(o_ref.dtype)


# ---------------------------------------------------------------------------
# Conv wrapper
# ---------------------------------------------------------------------------
def conv3x3(x, w, b, *, relu, out_dtype):
    """3x3 stride-1 'same' conv on an NHWC input via Pallas.

    x: (B, H, W, Cin) float32 or bfloat16
    w: (3, 3, Cin, Cout) float32 (HWIO)
    b: (Cout,) float32
    """
    B, H, W, cin = x.shape
    cout = w.shape[-1]
    cout_p = _round_up(cout, 128)
    if cout_p != cout:
        w = jnp.pad(w, ((0, 0), (0, 0), (0, 0), (0, cout_p - cout)))
        b = jnp.pad(b, (0, cout_p - cout))

    vmem_limit, tile_budget = _vmem_budgets()
    im2col = 9 * cin <= 128
    cin_eff = 9 * cin if im2col else cin
    TH = _pick_tile_h(H, W, cin_eff, cout_p, B, tile_budget)
    nt = -(-H // TH)
    Hp = nt * TH
    n = TH * W

    xb = x.astype(jnp.bfloat16)
    bf = b.reshape(1, cout_p).astype(jnp.float32)

    itemsize = np.dtype(out_dtype).itemsize
    flops = 2 * 9 * B * Hp * W * cin * cout_p
    out_bytes = B * Hp * W * cout_p * itemsize

    if im2col:
        # Tiny Cin: wrapper-side im2col -> lane-dense (.., 9*Cin) input, one matmul.
        xpad = jnp.pad(xb, ((0, 0), (1, 1), (1, 1), (0, 0)))
        cols = jnp.concatenate(
            [xpad[:, kh:kh + H, kw:kw + W, :]
             for kh in range(3) for kw in range(3)], axis=-1)    # (B, H, W, 9*Cin)
        if Hp != H:
            cols = jnp.pad(cols, ((0, 0), (0, Hp - H), (0, 0), (0, 0)))
        xt = cols.reshape(B, nt, n, 9 * cin)
        wb = w.reshape(9 * cin, cout_p).astype(jnp.bfloat16)     # reshape at trace time
        in_bytes = xt.size * 2 + wb.size * 2 + bf.size * 4
        out = pl.pallas_call(
            functools.partial(_matmul_bias_kernel, relu=relu),
            out_shape=jax.ShapeDtypeStruct((B, nt, n, cout_p), out_dtype),
            grid=(B, nt),
            in_specs=[
                pl.BlockSpec((None, None, n, 9 * cin), lambda bi, ti: (bi, ti, 0, 0)),
                pl.BlockSpec((9 * cin, cout_p), lambda bi, ti: (0, 0)),
                pl.BlockSpec((1, cout_p), lambda bi, ti: (0, 0)),
            ],
            out_specs=pl.BlockSpec((None, None, n, cout_p),
                                   lambda bi, ti: (bi, ti, 0, 0)),
            compiler_params=pltpu.CompilerParams(
                dimension_semantics=("parallel", "parallel"),
                vmem_limit_bytes=vmem_limit),
            cost_estimate=pl.CostEstimate(flops=flops, transcendentals=0,
                                          bytes_accessed=in_bytes + out_bytes),
        )(xt, wb, bf)
    else:
        if Hp != H:
            xb = jnp.pad(xb, ((0, 0), (0, Hp - H), (0, 0), (0, 0)))
        # Per-tile halo rows: only 2/TH of the activation, no full spatial re-pad.
        zrow = jnp.zeros((B, 1, W, cin), xb.dtype)
        top = jnp.concatenate([zrow, xb[:, TH - 1:Hp - 1:TH]], axis=1)  # (B, nt, W, cin)
        bot = jnp.concatenate([xb[:, TH:Hp:TH], zrow], axis=1)          # (B, nt, W, cin)
        xt = xb.reshape(B, nt, n, cin)
        wb = w.reshape(9, cin, cout_p).astype(jnp.bfloat16)
        in_bytes = xt.size * 2 + top.size * 2 + bot.size * 2 + wb.size * 2 + bf.size * 4
        out = pl.pallas_call(
            functools.partial(_conv3x3_kernel, TH=TH, W=W, relu=relu),
            out_shape=jax.ShapeDtypeStruct((B, nt, n, cout_p), out_dtype),
            grid=(B, nt),
            in_specs=[
                pl.BlockSpec((None, None, n, cin), lambda bi, ti: (bi, ti, 0, 0)),
                pl.BlockSpec((None, None, W, cin), lambda bi, ti: (bi, ti, 0, 0)),
                pl.BlockSpec((None, None, W, cin), lambda bi, ti: (bi, ti, 0, 0)),
                pl.BlockSpec((9, cin, cout_p), lambda bi, ti: (0, 0, 0)),  # resident
                pl.BlockSpec((1, cout_p), lambda bi, ti: (0, 0)),
            ],
            out_specs=pl.BlockSpec((None, None, n, cout_p),
                                   lambda bi, ti: (bi, ti, 0, 0)),
            compiler_params=pltpu.CompilerParams(
                dimension_semantics=("parallel", "parallel"),
                vmem_limit_bytes=vmem_limit),
            cost_estimate=pl.CostEstimate(flops=flops, transcendentals=0,
                                          bytes_accessed=in_bytes + out_bytes),
        )(xt, top, bot, wb, bf)

    out = out.reshape(B, Hp, W, cout_p)
    if Hp != H:
        out = out[:, :H]
    if cout_p != cout:
        out = out[..., :cout]        # lane-dense store inside; slice is XLA glue
    return out


# ---------------------------------------------------------------------------
# Parameters & forward
# ---------------------------------------------------------------------------
def init_params(key, in_features, num_anchors=9, feature_size=256):
    """He-normal conv1..conv4 (zero bias); zero-initialized output conv (as in PyTorch)."""
    params = []
    cins = [in_features, feature_size, feature_size, feature_size]
    keys = jax.random.split(key, 4)
    for k, cin in zip(keys, cins):
        std = math.sqrt(2.0 / (9 * cin))
        w = jax.random.normal(k, (3, 3, cin, feature_size), jnp.float32) * std
        params.append((w, jnp.zeros((feature_size,), jnp.float32)))
    params.append((jnp.zeros((3, 3, feature_size, num_anchors * 4), jnp.float32),
                   jnp.zeros((num_anchors * 4,), jnp.float32)))
    return params


def regression_forward(x_nchw, params):
    """Matches RegressionModel.forward: returns (B, 4, num_anchors*H*W) and features."""
    x = jnp.transpose(x_nchw, (0, 2, 3, 1))              # NCHW -> NHWC (XLA glue)
    feats = x
    for (w, b) in params[:-1]:
        feats = conv3x3(feats, w, b, relu=True, out_dtype=jnp.bfloat16)
    w, b = params[-1]
    out = conv3x3(feats, w, b, relu=False, out_dtype=jnp.float32)
    B, H, W, C = out.shape
    # PyTorch: out.contiguous().view(b, 4, -1) on the NCHW tensor.
    out_nchw = jnp.transpose(out, (0, 3, 1, 2))
    return out_nchw.reshape(B, 4, -1), feats


# ---------------------------------------------------------------------------
# Pure-JAX f32 reference (correctness checking only)
# ---------------------------------------------------------------------------
def _ref_conv(x, w, b, relu):
    y = jax.lax.conv_general_dilated(
        x.astype(jnp.float32), w, window_strides=(1, 1), padding="SAME",
        dimension_numbers=("NHWC", "HWIO", "NHWC"))
    y = y + b[None, None, None, :]
    return jnp.maximum(y, 0.0) if relu else y


def ref_forward(x_nchw, params):
    x = jnp.transpose(x_nchw, (0, 2, 3, 1))
    feats = x
    for (w, b) in params[:-1]:
        feats = _ref_conv(feats, w, b, relu=True)
    w, b = params[-1]
    out = _ref_conv(feats, w, b, relu=False)
    B, H, W, C = out.shape
    out_nchw = jnp.transpose(out, (0, 3, 1, 2))
    return out_nchw.reshape(B, 4, -1), feats


if __name__ == "__main__":
    # small shapes consistent with the module
    B, IN_FEATURES, H, W = 2, 4, 16, 16
    NUM_ANCHORS, FEATURE_SIZE = 9, 32

    key = jax.random.PRNGKey(0)
    k_x, k_p, k_u1, k_u2, k_b = jax.random.split(key, 5)
    x = jax.random.normal(k_x, (B, IN_FEATURES, H, W), jnp.float32)   # NCHW input
    params = init_params(k_p, IN_FEATURES, NUM_ANCHORS, FEATURE_SIZE)

    # --- unit checks of the conv kernels (bf16 matmul vs f32 reference) -----
    x_nhwc = jnp.transpose(x, (0, 2, 3, 1))

    # 1) first-layer path (tiny Cin -> wrapper im2col single matmul), fused ReLU
    w1, b1 = params[0]
    y_pal = conv3x3(x_nhwc, w1, b1, relu=True, out_dtype=jnp.float32)
    y_ref = _ref_conv(x_nhwc, w1, b1, relu=True)
    np.testing.assert_allclose(np.asarray(y_pal), np.asarray(y_ref),
                               atol=1e-1, rtol=5e-2)

    # 2) head-like path (Cin=32 per-tap accumulation, Cout=36 padded to 128)
    wh = jax.random.normal(k_u1, (3, 3, FEATURE_SIZE, NUM_ANCHORS * 4),
                           jnp.float32) * math.sqrt(2.0 / (9 * FEATURE_SIZE))
    bh = jax.random.normal(k_b, (NUM_ANCHORS * 4,), jnp.float32) * 0.1
    xh = jax.random.normal(k_u2, (B, H, W, FEATURE_SIZE), jnp.float32)
    y_pal = conv3x3(xh, wh, bh, relu=False, out_dtype=jnp.float32)
    y_ref = _ref_conv(xh, wh, bh, relu=False)
    np.testing.assert_allclose(np.asarray(y_pal), np.asarray(y_ref),
                               atol=1e-1, rtol=5e-2)

    # --- full forward (jitted so inter-kernel glue fuses) -------------------
    fwd = jax.jit(regression_forward)
    out, feats = fwd(x, params)
    out = jax.block_until_ready(out)
    feats = jax.block_until_ready(feats)

    # shape check: (B, 4, num_anchors * H * W)
    assert out.shape == (B, 4, NUM_ANCHORS * H * W), out.shape

    ref_out, ref_feats = ref_forward(x, params)
    # bf16 activations / matmuls across 4 chained convs -> loose tolerance
    np.testing.assert_allclose(np.asarray(feats.astype(jnp.float32)),
                               np.asarray(ref_feats), atol=2e-1, rtol=1e-1)
    # head is zero-initialized per the module -> exact
    np.testing.assert_allclose(np.asarray(out), np.asarray(ref_out),
                               atol=1e-5, rtol=1e-5)

    print("KERNEL_OK")
</pallas_src>

<mosaic_0001>
module attributes {stable_mosaic.version = 11 : i64} {
  func.func @_matmul_bias_kernel(%arg0: i32, %arg1: i32, %arg2: memref<1x1x128x36xbf16, #tpu.memory_space<vmem>>, %arg3: memref<36x128xbf16, #tpu.memory_space<vmem>>, %arg4: memref<1x128xf32, #tpu.memory_space<vmem>>, %arg5: memref<1x1x128x128xf32, #tpu.memory_space<vmem>>) attributes {dimension_semantics = [#tpu.dimension_semantics<parallel>, #tpu.dimension_semantics<parallel>], iteration_bounds = array<i64: 2, 2>, scalar_prefetch = 0 : i64, scratch_operands = 0 : i64, tpu.core_type = #tpu.core_type<tc>, window_params = [{transform_indices = @transform_0, window_bounds = array<i64: 1, 1, 128, 36>}, {pipeline_mode = #tpu.pipeline_mode<synchronous>, transform_indices = @transform_1, window_bounds = array<i64: 36, 128>}, {pipeline_mode = #tpu.pipeline_mode<synchronous>, transform_indices = @transform_2, window_bounds = array<i64: 1, 128>}, {transform_indices = @transform_3, window_bounds = array<i64: 1, 1, 128, 128>}]} {
    %c0 = arith.constant 0 : index
    %c0_0 = arith.constant 0 : index
    %c0_1 = arith.constant 0 : index
    %c0_2 = arith.constant 0 : index
    %0 = vector.load %arg2[%c0, %c0_0, %c0_1, %c0_2] : memref<1x1x128x36xbf16, #tpu.memory_space<vmem>>, vector<1x1x128x36xbf16>
    %1 = vector.shape_cast %0 : vector<1x1x128x36xbf16> to vector<128x36xbf16>
    %c0_3 = arith.constant 0 : index
    %c0_4 = arith.constant 0 : index
    %2 = vector.load %arg3[%c0_3, %c0_4] : memref<36x128xbf16, #tpu.memory_space<vmem>>, vector<36x128xbf16>
    %cst = arith.constant dense<0.000000e+00> : vector<128x128xf32>
    %3 = tpu.matmul %1, %2, %cst {dimension_numbers = #tpu.dot_dimension_numbers<[1], [0], [0], [1], [0, 0, 1, 1], [], []>} : vector<128x36xbf16>, vector<36x128xbf16>, vector<128x128xf32> -> vector<128x128xf32>
    %c0_5 = arith.constant 0 : index
    %c0_6 = arith.constant 0 : index
    %4 = vector.load %arg4[%c0_5, %c0_6] : memref<1x128xf32, #tpu.memory_space<vmem>>, vector<1x128xf32>
    %5 = vector.broadcast %4 : vector<1x128xf32> to vector<128x128xf32>
    %6 = arith.addf %3, %5 : vector<128x128xf32>
    %cst_7 = arith.constant 0.000000e+00 : f32
    %7 = vector.broadcast %cst_7 : f32 to vector<128x128xf32>
    %8 = arith.maximumf %6, %7 : vector<128x128xf32>
    %c0_8 = arith.constant 0 : index
    %c0_9 = arith.constant 0 : index
    %c0_10 = arith.constant 0 : index
    %c0_11 = arith.constant 0 : index
    %9 = vector.load %arg5[%c0_8, %c0_9, %c0_10, %c0_11] : memref<1x1x128x128xf32, #tpu.memory_space<vmem>>, vector<1x1x128x128xf32>
    %10 = vector.shape_cast %9 : vector<1x1x128x128xf32> to vector<128x128xf32>
    %11 = vector.shape_cast %8 : vector<128x128xf32> to vector<1x1x128x128xf32>
    tpu.vector_store %arg5[%c0_8, %c0_9, %c0_10, %c0_11], %11 {strides = array<i32>} : memref<1x1x128x128xf32, #tpu.memory_space<vmem>>, vector<1x1x128x128xf32>,
    return
  }
  func.func @transform_0(%arg0: i32, %arg1: i32) -> (i32, i32, i32, i32) {
    %c0_i32 = arith.constant 0 : i32
    %c0_i32_0 = arith.constant 0 : i32
    %c0_i32_1 = arith.constant 0 : i32
    return %arg0, %arg1, %c0_i32, %c0_i32_0 : i32, i32, i32, i32
  }
  func.func @transform_1(%arg0: i32, %arg1: i32) -> (i32, i32) {
    %c0_i32 = arith.constant 0 : i32
    %c0_i32_0 = arith.constant 0 : i32
    %c0_i32_1 = arith.constant 0 : i32
    return %c0_i32, %c0_i32_0 : i32, i32
  }
  func.func @transform_2(%arg0: i32, %arg1: i32) -> (i32, i32) {
    %c0_i32 = arith.constant 0 : i32
    %c0_i32_0 = arith.constant 0 : i32
    %c0_i32_1 = arith.constant 0 : i32
    return %c0_i32, %c0_i32_0 : i32, i32
  }
  func.func @transform_3(%arg0: i32, %arg1: i32) -> (i32, i32, i32, i32) {
    %c0_i32 = arith.constant 0 : i32
    %c0_i32_0 = arith.constant 0 : i32
    %c0_i32_1 = arith.constant 0 : i32
    return %arg0, %arg1, %c0_i32, %c0_i32_0 : i32, i32, i32, i32
  }
}

</mosaic_0001>

<llo_original>
// kernel: tpu_custom_call.1
$region0: #{tpu_custom_call.1}
  #allocation0 [shape = 'u32[]', space=smem, size = 0x4, offset = 0x4, fixed_abs, tag = 'smem constant byte address 0x4 - core index']
  #allocation1 [shape = 'u32[72,128]{1,0:T(1,128)}', space=vmem, size = 0x9000, scoped, tag = 'internal scratch']
  %s0 = inlined_call_operand.vmem [shape: bf16[2,2,128,36], index: 0, kind: input, shape index: {}]
  %s1 = inlined_call_operand.vmem [shape: bf16[36,128], index: 1, kind: input, shape index: {}]
  %s2 = inlined_call_operand.vmem [shape: f32[1,128], index: 2, kind: input, shape index: {}]
  %s3 = inlined_call_operand.hbm [shape: f32[2,2,128,128], index: 3, kind: output, shape index: {}]
  %s4 = sld [smem:[#allocation0]]
  $region45: #{tpu_custom_call.1} parent=0
    _
  %s6 = ssub.s32 1, %s4
  %s7 = scalar_select 0, %s6, %s4
  $region1: #{tpu_custom_call.1} parent=0
    #allocation2 [shape = 'u8[131072]{0}', space=vmem, size = 0x20000, scoped, tag = 'output window, operand 0']
    #allocation3 [shape = 's32[2]{0}', space=sflag, size = 0x8, scoped, tag = 'scoped memory for tpu_custom_call.1']
    %8 = vsyncpa [#allocation3], 0
    %s9 = scalar_lea.sflag [#allocation3], 1
    %10 = vsyncpa %s9, 0
    loop: start=0, step=1, limit=6
    $region2: #{tpu_custom_call.1} parent=1 // loop_pre_header
      _
    $region3: #{tpu_custom_call.1} parent=1 // loop_header
      %s12 = sphi 0, %s16
      %p13 = scmp.ge.s32.totalorder %s12, 6
      %s19 = sphi 0, %s31
      %s20 = sphi 0, %s27
      %s21 = sphi 0, %s19
      %s22 = sphi 0, %s20
      %s23 = sphi 0, %s21
      %s24 = sphi 0, %s22
      %s36 = sphi 0, %s38
      %s39 = sphi 0, %s36
      %s40 = sphi 0, %s39
      %s56 = sphi 0, %s40
      %s60 = sphi 0, %s60
      %s62 = sphi 0, %s60
      %s63 = sphi 0, %s62
      %s77 = sphi 0, %s63
      %s81 = sphi 0, %s81
      %s83 = sphi 0, %s81
      %s84 = sphi 0, %s83
      %s98 = sphi 0, %s84
      %s106 = sphi 0, %s108
      %s109 = sphi 0, %s106
      %s110 = sphi 0, %s109
      %s126 = sphi 0, %s110
    $region4: #{tpu_custom_call.1} parent=1 // loop_header_branch
      %15 = sbr.rel (%p13) target = $region8
    $region5: #{tpu_custom_call.1} parent=1 // loop_body
      %s17 = ssub.s32 %s12, 1
      %s18 = ssub.s32 %s12, 2
      %s25 = sadd.s32 1, %s20
      %p26 = scmp.ge.s32.totalorder %s25, 2
      %s27 = scalar_select %p26, 0, %s25
      %s28 = sadd.s32 1, %s19
      %s29 = scalar_select %p26, %s28, %s19
      %p30 = scmp.ge.s32.totalorder %s29, 2
      %s31 = scalar_select %p30, 0, %s29
      %s32 = ssub.s32 %s19, %s31
      %s33 = ssub.s32 %s20, %s27
      %s34 = sor.u32 %s32, %s33
      %p35 = scmp.eq.s32.totalorder %s34, 0
      %s37 = sadd.s32 %s36, 1
      %s38 = scalar_select %p35, %s36, %s37
      %p41 = pneg %p35
      %p42 = scmp.eq.s32.totalorder %s12, 3
      %p43 = por %p41, %p42
      %p44 = scmp.ne.s32.totalorder %s36, %s39
      %p45 = scmp.eq.s32.totalorder %s12, 0
      %p46 = por %p44, %p45
      %p47 = scmp.ne.s32.totalorder %s36, %s39
      %p48 = scmp.eq.s32.totalorder %s17, 3
      %p49 = por %p47, %p48
      %p50 = scmp.ne.s32.totalorder %s39, %s40
      %p51 = scmp.eq.s32.totalorder %s17, 0
      %p52 = por %p50, %p51
      %p53 = scmp.ne.s32.totalorder %s39, %s40
      %p54 = scmp.eq.s32.totalorder %s18, 3
      %p55 = por %p53, %p54
      %p57 = scmp.ne.s32.totalorder %s40, %s56
      %p58 = scmp.eq.s32.totalorder %s18, 0
      %p59 = por %p57, %p58
      %s61 = sadd.s32 %s60, 1
      %p64 = scmp.eq.s32.totalorder %s12, 3
      %p65 = scmp.ne.s32.totalorder %s60, %s62
      %p66 = scmp.eq.s32.totalorder %s12, 0
      %p67 = por %p65, %p66
      %p68 = scmp.ne.s32.totalorder %s60, %s62
      %p69 = scmp.eq.s32.totalorder %s17, 3
      %p70 = por %p68, %p69
      %p71 = scmp.ne.s32.totalorder %s62, %s63
      %p72 = scmp.eq.s32.totalorder %s17, 0
      %p73 = por %p71, %p72
      %p74 = scmp.ne.s32.totalorder %s62, %s63
      %p75 = scmp.eq.s32.totalorder %s18, 3
      %p76 = por %p74, %p75
      %p78 = scmp.ne.s32.totalorder %s63, %s77
      %p79 = scmp.eq.s32.totalorder %s18, 0
      %p80 = por %p78, %p79
      %s82 = sadd.s32 %s81, 1
      %p85 = scmp.eq.s32.totalorder %s12, 3
      %p86 = scmp.ne.s32.totalorder %s81, %s83
      %p87 = scmp.eq.s32.totalorder %s12, 0
      %p88 = por %p86, %p87
      %p89 = scmp.ne.s32.totalorder %s81, %s83
      %p90 = scmp.eq.s32.totalorder %s17, 3
      %p91 = por %p89, %p90
      %p92 = scmp.ne.s32.totalorder %s83, %s84
      %p93 = scmp.eq.s32.totalorder %s17, 0
      %p94 = por %p92, %p93
      %p95 = scmp.ne.s32.totalorder %s83, %s84
      %p96 = scmp.eq.s32.totalorder %s18, 3
      %p97 = por %p95, %p96
      %p99 = scmp.ne.s32.totalorder %s84, %s98
      %p100 = scmp.eq.s32.totalorder %s18, 0
      %p101 = por %p99, %p100
      %s102 = ssub.s32 %s19, %s31
      %s103 = ssub.s32 %s20, %s27
      %s104 = sor.u32 %s102, %s103
      %p105 = scmp.eq.s32.totalorder %s104, 0
      %s107 = sadd.s32 %s106, 1
      %s108 = scalar_select %p105, %s106, %s107
      %p111 = pneg %p105
      %p112 = scmp.eq.s32.totalorder %s12, 3
      %p113 = por %p111, %p112
      %p114 = scmp.ne.s32.totalorder %s106, %s109
      %p115 = scmp.eq.s32.totalorder %s12, 0
      %p116 = por %p114, %p115
      %p117 = scmp.ne.s32.totalorder %s106, %s109
      %p118 = scmp.eq.s32.totalorder %s17, 3
      %p119 = por %p117, %p118
      %p120 = scmp.ne.s32.totalorder %s109, %s110
      %p121 = scmp.eq.s32.totalorder %s17, 0
      %p122 = por %p120, %p121
      %p123 = scmp.ne.s32.totalorder %s109, %s110
      %p124 = scmp.eq.s32.totalorder %s18, 3
      %p125 = por %p123, %p124
      %p127 = scmp.ne.s32.totalorder %s110, %s126
      %p128 = scmp.eq.s32.totalorder %s18, 0
      %p129 = por %p127, %p128
      %p130 = scmp.le.s32.totalorder 1, %s12
      %p131 = scmp.lt.s32.totalorder %s12, 5
      %p132 = pnand %p130, %p131
      %p133 = pneg %p132
      // Predicated region
      $region9: #{tpu_custom_call.1} parent=5 // pred_check
        _
      $region10: #{tpu_custom_call.1} parent=5 // pred_check_branch
        %135 = sbr.rel (%p132) target = $region12
      $region11: #{tpu_custom_call.1} parent=5 // pred_region
        %s136 = ssub.s32 %s12, 1
        // Predicated region
        $region13: #{tpu_custom_call.1} parent=11 // pred_check
          %p137 = pneg %p73
        $region14: #{tpu_custom_call.1} parent=11 // pred_check_branch
          %139 = sbr.rel (%p137) target = $region16
        $region15: #{tpu_custom_call.1} parent=11 // pred_region
          _
        $region16: #{tpu_custom_call.1} parent=11 // pred_fallthru
          _
        // Predicated region
        $region17: #{tpu_custom_call.1} parent=11 // pred_check
          %p140 = pneg %p94
        $region18: #{tpu_custom_call.1} parent=11 // pred_check_branch
          %142 = sbr.rel (%p140) target = $region20
        $region19: #{tpu_custom_call.1} parent=11 // pred_region
          _
        $region20: #{tpu_custom_call.1} parent=11 // pred_fallthru
          _
      $region12: #{tpu_custom_call.1} parent=5 // pred_fallthru
        _
      %p143 = scmp.lt.s32.totalorder %s12, 4
      // Predicated region
      $region21: #{tpu_custom_call.1} parent=5 // pred_check
        %p144 = pneg %p143
      $region22: #{tpu_custom_call.1} parent=5 // pred_check_branch
        %146 = sbr.rel (%p144) target = $region24
      $region23: #{tpu_custom_call.1} parent=5 // pred_region
        // Predicated region
        $region25: #{tpu_custom_call.1} parent=23 // pred_check
          %p147 = pneg %p46
        $region26: #{tpu_custom_call.1} parent=23 // pred_check_branch
          %149 = sbr.rel (%p147) target = $region28
        $region27: #{tpu_custom_call.1} parent=23 // pred_region
          %p150 = scmp.lt.s32.totalorder %s19, 1
          %s151 = scalar_select %p150, %s19, 1
          %p152 = scmp.lt.s32.totalorder %s20, 1
          %s153 = scalar_select %p152, %s20, 1
          %s154 = smul.addr %s153, 16
          %s155 = smul.addr %s151, 32
          %s156 = sadd.s32 %s154, %s155
          %s157 = smul.addr %s156, 4
          %s158 = scalar_lea.vmem %s0, %s157
        $region28: #{tpu_custom_call.1} parent=23 // pred_fallthru
          _
      $region24: #{tpu_custom_call.1} parent=5 // pred_fallthru
        _
      %p159 = scmp.le.s32.totalorder 1, %s12
      %p160 = scmp.lt.s32.totalorder %s12, 5
      %p161 = pnand %p159, %p160
      %p162 = pneg %p161
      // Predicated region
      $region29: #{tpu_custom_call.1} parent=5 // pred_check
        _
      $region30: #{tpu_custom_call.1} parent=5 // pred_check_branch
        %164 = sbr.rel (%p161) target = $region32
      $region31: #{tpu_custom_call.1} parent=5 // pred_region
        %s165 = ssub.s32 %s12, 1
        %p166 = scmp.lt.s32.totalorder %s21, 1
        %s167 = scalar_select %p166, %s21, 1
        %p168 = scmp.lt.s32.totalorder %s22, 1
        %s169 = scalar_select %p168, %s22, 1
        %s170 = smul.addr %s169, 16
        %s171 = smul.addr %s167, 32
        %s172 = sadd.s32 %s170, %s171
        %s173 = smul.addr %s172, 4
        %s174 = scalar_lea.vmem %s0, %s173
        %p175 = pneg %p52
        %p176 = pneg %p49
        %p177 = pneg %p73
        %p178 = pneg %p70
        %p179 = pneg %p94
        %p180 = pneg %p91
        %p181 = pneg %p122
        %p182 = pneg %p119
        %s183 = sand.u32 %s109, 1
        %s184 = scalar_lea.sflag [#allocation3], %s183
        %s185 = sand.u32 %s109, 1
        %s186 = smul.addr %s185, 128
        %s187 = scalar_lea.vmem [#allocation2], %s186
        %p188 = scmp.lt.s32.totalorder %s21, 1
        %s189 = scalar_select %p188, %s21, 1
        %p190 = scmp.lt.s32.totalorder %s22, 1
        %s191 = scalar_select %p190, %s22, 1
        %s192 = smul.addr %s191, 16
        %s193 = smul.addr %s189, 32
        %s194 = sadd.s32 %s192, %s193
        %s195 = smul.addr %s194, 4
        %s196 = scalar_lea.vmem %s0, %s195
        %v198 = vld [vmem:[%s196] sm:$0xf]
        %v199 = vld [vmem:[%s196 + $0x4] sm:$0xf]
        %v200 = vld [vmem:[%s196 + $0x8] sm:$0xf]
        %v201 = vld [vmem:[%s196 + $0xc] sm:$0xf]
        %v202 = vld [vmem:[%s196 + $0x10] sm:$0xf]
        %v203 = vld [vmem:[%s196 + $0x14] sm:$0xf]
        %v204 = vld [vmem:[%s196 + $0x18] sm:$0xf]
        %v205 = vld [vmem:[%s196 + $0x1c] sm:$0xf]
        %v206 = vld [vmem:[%s196 + $0x20] sm:$0xf]
        %v207 = vld [vmem:[%s196 + $0x24] sm:$0xf]
        %v208 = vld [vmem:[%s196 + $0x28] sm:$0xf]
        %v209 = vld [vmem:[%s196 + $0x2c] sm:$0xf]
        %v210 = vld [vmem:[%s196 + $0x30] sm:$0xf]
        %v211 = vld [vmem:[%s196 + $0x34] sm:$0xf]
        %v212 = vld [vmem:[%s196 + $0x38] sm:$0xf]
        %v213 = vld [vmem:[%s196 + $0x3c] sm:$0xf]
        %v214 = vld [vmem:[%s1] sm:$0xf]
        %v215 = vld [vmem:[%s1 + $0x4] sm:$0xf]
        %v216 = vld [vmem:[%s1 + $0x8] sm:$0xf]
        %v217 = vld [vmem:[%s1 + $0xc] sm:$0xf]
        %v218 = vld [vmem:[%s1 + $0x10] sm:$0x3]
        %v219 = vld [vmem:[%s2] sm:$0x1]
        %v221 = vperm.slane %v219, 0
        %v239 = vunpack.c.l.b16 %v198
        %v240 = vunpack.c.l.b16 %v199
        %v241 = vunpack.c.l.b16 %v200
        %v242 = vunpack.c.l.b16 %v201
        %v243 = vunpack.c.l.b16 %v202
        %v244 = vunpack.c.l.b16 %v203
        %v245 = vunpack.c.l.b16 %v204
        %v246 = vunpack.c.l.b16 %v205
        %v247 = vunpack.c.l.b16 %v206
        %v248 = vunpack.c.l.b16 %v207
        %v249 = vunpack.c.l.b16 %v208
        %v250 = vunpack.c.l.b16 %v209
        %v251 = vunpack.c.l.b16 %v210
        %v252 = vunpack.c.l.b16 %v211
        %v253 = vunpack.c.l.b16 %v212
        %v254 = vunpack.c.l.b16 %v213
        %v255 = vpack.c.b16 %v240, %v239
        %v256 = vpack.c.b16 %v242, %v241
        %v257 = vpack.c.b16 %v244, %v243
        %v258 = vpack.c.b16 %v246, %v245
        %v259 = vpack.c.b16 %v248, %v247
        %v260 = vpack.c.b16 %v250, %v249
        %v261 = vpack.c.b16 %v252, %v251
        %v262 = vpack.c.b16 %v254, %v253
        %v268 = vunpack.c.l.b16 %v214
        %v269 = vunpack.c.l.b16 %v215
        %v270 = vunpack.c.l.b16 %v216
        %v271 = vunpack.c.l.b16 %v217
        %v272 = vunpack.c.l.b16 %v218
        %v273 = vpack.c.b16 %v269, %v268
        %v274 = vpack.c.b16 %v271, %v270
        %v275 = vpack.c.b16 %v272, %v272
        %vm278 = vcmask 293888
        %v280 = vsel %vm278, %v255, 0
        %v283 = vsel %vm278, %v256, 0
        %v286 = vsel %vm278, %v257, 0
        %v289 = vsel %vm278, %v258, 0
        %v292 = vsel %vm278, %v259, 0
        %v295 = vsel %vm278, %v260, 0
        %v298 = vsel %vm278, %v261, 0
        %v301 = vsel %vm278, %v262, 0
        %vm303 = vcmask 1041408
        %v305 = vsel %vm303, %v275, 0
        %307 = vmatpush.bf16.msra.mxu0 0
        %308 = vmatpush.bf16.msra.mxu0 0
        %309 = vmatpush.bf16.msra.mxu0 0
        %310 = vmatpush.bf16.msra.mxu0 0
        %311 = vmatpush.bf16.msra.mxu0 0
        %312 = vmatpush.bf16.msra.mxu0 %v305
        %313 = vmatpush.bf16.msra.mxu0 %v274
        %314 = vmatpush.bf16.msra.mxu0 %v273
        %315 = vmatmul.bf16.gmra.mxu0 %v280
        %v316 = vpop.f32.mrf.mxu0
        %v317 = vadd.f32 %v221, %v316
        %v318 = vpop.f32.mrf.mxu0
        %v319 = vadd.f32 %v221, %v318
        %320 = vmatmul.bf16.gmra.mxu0 %v283
        %v321 = vpop.f32.mrf.mxu0
        %v322 = vadd.f32 %v221, %v321
        %v323 = vpop.f32.mrf.mxu0
        %v324 = vadd.f32 %v221, %v323
        %325 = vmatmul.bf16.gmra.mxu0 %v286
        %v326 = vpop.f32.mrf.mxu0
        %v327 = vadd.f32 %v221, %v326
        %v328 = vpop.f32.mrf.mxu0
        %v329 = vadd.f32 %v221, %v328
        %330 = vmatmul.bf16.gmra.mxu0 %v289
        %v331 = vpop.f32.mrf.mxu0
        %v332 = vadd.f32 %v221, %v331
        %v333 = vpop.f32.mrf.mxu0
        %v334 = vadd.f32 %v221, %v333
        %335 = vmatmul.bf16.gmra.mxu0 %v292
        %v336 = vpop.f32.mrf.mxu0
        %v337 = vadd.f32 %v221, %v336
        %v338 = vpop.f32.mrf.mxu0
        %v339 = vadd.f32 %v221, %v338
        %340 = vmatmul.bf16.gmra.mxu0 %v295
        %v341 = vpop.f32.mrf.mxu0
        %v342 = vadd.f32 %v221, %v341
        %v343 = vpop.f32.mrf.mxu0
        %v344 = vadd.f32 %v221, %v343
        %345 = vmatmul.bf16.gmra.mxu0 %v298
        %v346 = vpop.f32.mrf.mxu0
        %v347 = vadd.f32 %v221, %v346
        %v348 = vpop.f32.mrf.mxu0
        %v349 = vadd.f32 %v221, %v348
        %350 = vmatmul.bf16.gmra.mxu0 %v301
        %v351 = vpop.f32.mrf.mxu0
        %v352 = vadd.f32 %v221, %v351
        %v353 = vpop.f32.mrf.mxu0
        %v354 = vadd.f32 %v221, %v353
        %355 = vdwg.mxu0
        %v356 = vmax.f32 %v317, 0.0
        %v357 = vmax.f32 %v319, 0.0
        %v358 = vmax.f32 %v322, 0.0
        %v359 = vmax.f32 %v324, 0.0
        %v360 = vmax.f32 %v327, 0.0
        %v361 = vmax.f32 %v329, 0.0
        %v362 = vmax.f32 %v332, 0.0
        %v363 = vmax.f32 %v334, 0.0
        %v364 = vmax.f32 %v337, 0.0
        %v365 = vmax.f32 %v339, 0.0
        %v366 = vmax.f32 %v342, 0.0
        %v367 = vmax.f32 %v344, 0.0
        %v368 = vmax.f32 %v347, 0.0
        %v369 = vmax.f32 %v349, 0.0
        %v370 = vmax.f32 %v352, 0.0
        %v371 = vmax.f32 %v354, 0.0
        %372 = vst [vmem:[%s187] sm:$0xff] %v356
        %373 = vst [vmem:[%s187 + $0x8] sm:$0xff] %v357
        %374 = vst [vmem:[%s187 + $0x10] sm:$0xff] %v358
        %375 = vst [vmem:[%s187 + $0x18] sm:$0xff] %v359
        %376 = vst [vmem:[%s187 + $0x20] sm:$0xff] %v360
        %377 = vst [vmem:[%s187 + $0x28] sm:$0xff] %v361
        %378 = vst [vmem:[%s187 + $0x30] sm:$0xff] %v362
        %379 = vst [vmem:[%s187 + $0x38] sm:$0xff] %v363
        %380 = vst [vmem:[%s187 + $0x40] sm:$0xff] %v364
        %381 = vst [vmem:[%s187 + $0x48] sm:$0xff] %v365
        %382 = vst [vmem:[%s187 + $0x50] sm:$0xff] %v366
        %383 = vst [vmem:[%s187 + $0x58] sm:$0xff] %v367
        %384 = vst [vmem:[%s187 + $0x60] sm:$0xff] %v368
        %385 = vst [vmem:[%s187 + $0x68] sm:$0xff] %v369
        %386 = vst [vmem:[%s187 + $0x70] sm:$0xff] %v370
        %387 = vst [vmem:[%s187 + $0x78] sm:$0xff] %v371
        %s388 = sand.u32 %s109, 1
        %s389 = scalar_lea.sflag [#allocation3], %s388
        %s390 = sand.u32 %s109, 1
        %s391 = smul.addr %s390, 128
        %s392 = scalar_lea.vmem [#allocation2], %s391
        // Predicated region
        $region33: #{tpu_custom_call.1} parent=31 // pred_check
          %p393 = pneg %p119
        $region34: #{tpu_custom_call.1} parent=31 // pred_check_branch
          %395 = sbr.rel (%p393) target = $region36
        $region35: #{tpu_custom_call.1} parent=31 // pred_region
          %397 = vsyncadd %s389, 0
          %s398 = smul.addr %s22, 16
          %s399 = smul.addr %s21, 32
          %s400 = sadd.s32 %s398, %s399
          %s401 = smul.addr %s400, 8
          %s402 = scalar_lea.hbm %s3, %s401
          %s403 = sshll.u32 %s392, 4
          %s404 = int_to_ptr.vmem [resolvable:$true] %s403
          %s405 = sshll.u32 %s402, 4
          %s406 = int_to_ptr.hbm [resolvable:$true] %s405
          %411 = dma.vmem_to_hbm [thread:$0]  %s404, 2048, %s406, %s389, 128, 128, 8
        $region36: #{tpu_custom_call.1} parent=31 // pred_fallthru
          _
      $region32: #{tpu_custom_call.1} parent=5 // pred_fallthru
        _
      %p412 = scmp.le.s32.totalorder 2, %s12
      // Predicated region
      $region37: #{tpu_custom_call.1} parent=5 // pred_check
        %p413 = pneg %p412
      $region38: #{tpu_custom_call.1} parent=5 // pred_check_branch
        %415 = sbr.rel (%p413) target = $region40
      $region39: #{tpu_custom_call.1} parent=5 // pred_region
        %s416 = ssub.s32 %s12, 2
        // Predicated region
        $region41: #{tpu_custom_call.1} parent=39 // pred_check
          %p417 = pneg %p125
        $region42: #{tpu_custom_call.1} parent=39 // pred_check_branch
          %419 = sbr.rel (%p417) target = $region44
        $region43: #{tpu_custom_call.1} parent=39 // pred_region
          %s420 = sand.u32 %s110, 1
          %s421 = scalar_lea.sflag [#allocation3], %s420
          %s422 = sand.u32 %s110, 1
          %s423 = smul.addr %s422, 128
          %s424 = scalar_lea.vmem [#allocation2], %s423
          %426 = dma.done %s421, 2048
        $region44: #{tpu_custom_call.1} parent=39 // pred_fallthru
          _
      $region40: #{tpu_custom_call.1} parent=5 // pred_fallthru
        _
    $region6: #{tpu_custom_call.1} parent=1 // loop_footer
      %s16 = sadd.s32 1, %s12
    $region7: #{tpu_custom_call.1} parent=1 // loop_footer_branch
      %11 = sbr.rel target = $region3
    $region8: #{tpu_custom_call.1} parent=1 // loop_exit
      _
    %427 = vsyncpa [#allocation3], 1
    %s428 = scalar_lea.sflag [#allocation3], 1
    %429 = vsyncpa %s428, 1

</llo_original>
